<compile_context>
chip_gen: v7x
topology: tpu7x:2x2x1
jax: 0.10.0
libtpu: 0.0.40
codegen_flags: <defaults>
</compile_context>

<pallas_src>
import functools

import numpy as np
import jax
import jax.numpy as jnp
from jax.experimental import pallas as pl
from jax.experimental.pallas import tpu as pltpu


def _pad_to(v, m):
    return ((v + m - 1) // m) * m


def _any_head_kernel(x_ref, wt_ref, b_ref, o_ref, acc_ref, *,
                     inv_hw, hw_total, tile_hw):
    """One (batch-tile, hw-tile) grid step of the fused AnyHead forward."""
    k = pl.program_id(1)                      # HW (reduction) axis, last in grid

    @pl.when(k == 0)
    def _():
        acc_ref[...] = jnp.zeros_like(acc_ref)

    x = x_ref[...]                            # (tile_n, C, tile_hw), native dtype
    if hw_total % tile_hw != 0:
        # Ragged final HW tile: mask lanes beyond the true spatial extent.
        lane = jax.lax.broadcasted_iota(jnp.int32, x.shape, 2)
        x = jnp.where(k * tile_hw + lane < hw_total, x, jnp.zeros_like(x))

    # Stream the widen into the reduction (no full f32 copy of the slab).
    acc_ref[...] += jnp.sum(x, axis=-1, dtype=jnp.float32)

    @pl.when(k == pl.num_programs(1) - 1)
    def _():
        pooled = acc_ref[...] * inv_hw                           # (tile_n, C) f32
        out = jnp.dot(pooled, wt_ref[...].astype(jnp.float32),
                      preferred_element_type=jnp.float32,
                      precision=jax.lax.Precision.HIGHEST)        # (tile_n, nc)
        out = out + b_ref[...].astype(jnp.float32)
        o_ref[...] = out.astype(o_ref.dtype)


def any_head(x, weight, bias, *, x_block_budget_bytes=8 << 20):
    """AnyHead forward: x (N, C, H, W), weight (nc, C), bias (nc,) -> (N, nc)."""
    N, C, H, W = x.shape
    nc = weight.shape[0]
    HW = H * W

    # Free (contiguous) reshape; tiny one-off weight transpose / bias reshape.
    x3 = x.reshape(N, C, HW)
    # TODO(synk): if an upstream NHWC producer is available, take (N, HW, C)
    # blocks instead so small 7x7 heads land dense on lanes (no wrapper
    # transpose should be added just for this — it would cost an HBM pass).
    wt = jnp.transpose(weight)                # (C, nc)
    b2 = bias.reshape(1, nc)

    x_isz = jnp.dtype(x.dtype).itemsize
    w_isz = jnp.dtype(weight.dtype).itemsize
    o_isz = jnp.dtype(x.dtype).itemsize

    pad_c8 = _pad_to(C, 8)                    # sublane padding of the x block
    pad_nc = _pad_to(nc, 128)                 # lane padding of weight/out/bias

    def x_block_bytes(tn, thw):
        # Lane padding to 128 on HW, sublane padding to 8 on C.
        return tn * pad_c8 * _pad_to(thw, 128) * x_isz

    # --- HW (reduction) tile ------------------------------------------------
    if x_block_bytes(1, HW) <= x_block_budget_bytes or HW <= 128:
        tile_hw = HW
    else:
        lanes = max(1, x_block_budget_bytes // (pad_c8 * 128 * x_isz))
        tile_hw = min(_pad_to(HW, 128), lanes * 128)   # multiple of 128
    grid_hw = pl.cdiv(HW, tile_hw)

    # --- batch tile -----------------------------------------------------------
    if N <= 8:
        tile_n = N                             # block dim == full array dim
    else:
        max_t = (N // 8) * 8
        tile_n = 8
        t = 16
        while t <= max_t and x_block_bytes(t, tile_hw) <= x_block_budget_bytes:
            tile_n = t
            t += 8
        # v7x megacore: keep >=2 batch-grid steps when N allows so the
        # "parallel" axis can shard across both TensorCores.
        if pl.cdiv(N, tile_n) < 2:
            tile_n = max(8, _pad_to(pl.cdiv(N, 2), 8))
    grid_n = pl.cdiv(N, tile_n)

    # --- full VMEM footprint & explicit limit --------------------------------
    xb = x_block_bytes(tile_n, tile_hw)                       # double-buffered
    wt_b = pad_c8 * pad_nc * w_isz                            # Buffered(1)
    bias_b = 8 * pad_nc * w_isz                               # Buffered(1)
    out_b = _pad_to(tile_n, 8) * pad_nc * o_isz               # double-buffered
    acc_b = _pad_to(tile_n, 8) * _pad_to(C, 128) * 4
    footprint = 2 * xb + wt_b + bias_b + 2 * out_b + acc_b
    vmem_limit = int(min(max(footprint + (4 << 20), 16 << 20), 60 << 20))
    # TODO(synk): for heads whose (C, nc) weight alone exceeds ~40 MiB, also
    # tile the weight along nc with an extra output-column grid axis.

    kernel = functools.partial(_any_head_kernel,
                               inv_hw=float(1.0 / HW),
                               hw_total=HW,
                               tile_hw=tile_hw)

    out = pl.pallas_call(
        kernel,
        out_shape=jax.ShapeDtypeStruct((N, nc), x.dtype),
        grid=(grid_n, grid_hw),
        in_specs=[
            pl.BlockSpec((tile_n, C, tile_hw), lambda i, k: (i, 0, k)),
            pl.BlockSpec((C, nc), lambda i, k: (0, 0),
                         pipeline_mode=pl.Buffered(1)),       # constant weight
            pl.BlockSpec((1, nc), lambda i, k: (0, 0),
                         pipeline_mode=pl.Buffered(1)),       # constant bias
        ],
        out_specs=pl.BlockSpec((tile_n, nc), lambda i, k: (i, 0)),
        scratch_shapes=[pltpu.VMEM((tile_n, C), jnp.float32)],
        compiler_params=pltpu.CompilerParams(
            dimension_semantics=("parallel", "arbitrary"),
            vmem_limit_bytes=vmem_limit),
    )(x3, wt, b2)
    return out


def _reference(x, weight, bias):
    """Pure-JAX reference mirroring the PyTorch AnyHead forward."""
    xf = x.astype(jnp.float32)
    pooled = jnp.mean(xf, axis=(2, 3))                         # (N, C)
    out = jnp.dot(pooled, weight.astype(jnp.float32).T,
                  precision=jax.lax.Precision.HIGHEST)
    out = out + bias.astype(jnp.float32)
    return out.astype(x.dtype)


if __name__ == "__main__":
    key = jax.random.PRNGKey(0)
    k1, k2, k3 = jax.random.split(key, 3)

    # Small shapes consistent with the module: NCHW feature map into the head,
    # w_in channels -> nc classes.
    batch, w_in, spatial, nc = 2, 32, 16, 8
    x = jax.random.normal(k1, (batch, w_in, spatial, spatial), dtype=jnp.float32)
    weight = (jax.random.normal(k2, (nc, w_in), dtype=jnp.float32)
              * (1.0 / np.sqrt(w_in)))                         # nn.Linear-style scale
    bias = jax.random.normal(k3, (nc,), dtype=jnp.float32) * 0.1

    out = any_head(x, weight, bias)
    out = jax.block_until_ready(out)

    ref = _reference(x, weight, bias)
    np.testing.assert_allclose(np.asarray(out), np.asarray(ref),
                               rtol=1e-4, atol=1e-4)
    print("KERNEL_OK")
</pallas_src>

<mosaic_0001>
module attributes {stable_mosaic.version = 11 : i64} {
  func.func @_any_head_kernel(%arg0: i32, %arg1: i32, %arg2: memref<2x32x256xf32, #tpu.memory_space<vmem>>, %arg3: memref<32x8xf32, #tpu.memory_space<vmem>>, %arg4: memref<1x8xf32, #tpu.memory_space<vmem>>, %arg5: memref<2x8xf32, #tpu.memory_space<vmem>>, %arg6: memref<2x32xf32, #tpu.memory_space<vmem>>) attributes {dimension_semantics = [#tpu.dimension_semantics<parallel>, #tpu.dimension_semantics<arbitrary>], iteration_bounds = array<i64: 1, 1>, scalar_prefetch = 0 : i64, scratch_operands = 1 : i64, tpu.core_type = #tpu.core_type<tc>, window_params = [{transform_indices = @transform_0, window_bounds = array<i64: 2, 32, 256>}, {pipeline_mode = #tpu.pipeline_mode<synchronous>, transform_indices = @transform_1, window_bounds = array<i64: 32, 8>}, {pipeline_mode = #tpu.pipeline_mode<synchronous>, transform_indices = @transform_2, window_bounds = array<i64: 1, 8>}, {transform_indices = @transform_3, window_bounds = array<i64: 2, 8>}]} {
    %c0_i32 = arith.constant 0 : i32
    %0 = arith.cmpi eq, %arg1, %c0_i32 : i32
    %1 = arith.extui %0 : i1 to i32
    %c0_i32_0 = arith.constant 0 : i32
    %2 = arith.cmpi ne, %1, %c0_i32_0 : i32
    scf.if %2 {
      %cst_9 = arith.constant 0.000000e+00 : f32
      %11 = vector.broadcast %cst_9 : f32 to vector<2x32xf32>
      %c0_10 = arith.constant 0 : index
      %c0_11 = arith.constant 0 : index
      %12 = vector.load %arg6[%c0_10, %c0_11] : memref<2x32xf32, #tpu.memory_space<vmem>>, vector<2x32xf32>
      tpu.vector_store %arg6[%c0_10, %c0_11], %11 {strides = array<i32>} : memref<2x32xf32, #tpu.memory_space<vmem>>, vector<2x32xf32>,
    } else {
    }
    %c0 = arith.constant 0 : index
    %c0_1 = arith.constant 0 : index
    %c0_2 = arith.constant 0 : index
    %3 = vector.load %arg2[%c0, %c0_1, %c0_2] : memref<2x32x256xf32, #tpu.memory_space<vmem>>, vector<2x32x256xf32>
    %c0_3 = arith.constant 0 : index
    %c0_4 = arith.constant 0 : index
    %4 = vector.load %arg6[%c0_3, %c0_4] : memref<2x32xf32, #tpu.memory_space<vmem>>, vector<2x32xf32>
    %cst = arith.constant dense<0.000000e+00> : vector<2x32xf32>
    %5 = vector.multi_reduction <add>, %3, %cst [2] : vector<2x32x256xf32> to vector<2x32xf32>
    %6 = arith.addf %4, %5 : vector<2x32xf32>
    %c0_5 = arith.constant 0 : index
    %c0_6 = arith.constant 0 : index
    %7 = vector.load %arg6[%c0_5, %c0_6] : memref<2x32xf32, #tpu.memory_space<vmem>>, vector<2x32xf32>
    tpu.vector_store %arg6[%c0_5, %c0_6], %6 {strides = array<i32>} : memref<2x32xf32, #tpu.memory_space<vmem>>, vector<2x32xf32>,
    %c0_i32_7 = arith.constant 0 : i32
    %8 = arith.cmpi eq, %arg1, %c0_i32_7 : i32
    %9 = arith.extui %8 : i1 to i32
    %c0_i32_8 = arith.constant 0 : i32
    %10 = arith.cmpi ne, %9, %c0_i32_8 : i32
    scf.if %10 {
      %c0_9 = arith.constant 0 : index
      %c0_10 = arith.constant 0 : index
      %11 = vector.load %arg6[%c0_9, %c0_10] : memref<2x32xf32, #tpu.memory_space<vmem>>, vector<2x32xf32>
      %cst_11 = arith.constant 3.906250e-03 : f32
      %12 = vector.broadcast %cst_11 : f32 to vector<2x32xf32>
      %13 = arith.mulf %11, %12 : vector<2x32xf32>
      %c0_12 = arith.constant 0 : index
      %c0_13 = arith.constant 0 : index
      %14 = vector.load %arg3[%c0_12, %c0_13] : memref<32x8xf32, #tpu.memory_space<vmem>>, vector<32x8xf32>
      %cst_14 = arith.constant dense<0.000000e+00> : vector<2x8xf32>
      %15 = tpu.matmul %13, %14, %cst_14 {dimension_numbers = #tpu.dot_dimension_numbers<[1], [0], [0], [1], [0, 0, 1, 1], [], []>, precision = #tpu.contract_precision<fp32>} : vector<2x32xf32>, vector<32x8xf32>, vector<2x8xf32> -> vector<2x8xf32>
      %c0_15 = arith.constant 0 : index
      %c0_16 = arith.constant 0 : index
      %16 = vector.load %arg4[%c0_15, %c0_16] : memref<1x8xf32, #tpu.memory_space<vmem>>, vector<1x8xf32>
      %17 = vector.broadcast %16 : vector<1x8xf32> to vector<2x8xf32>
      %18 = arith.addf %15, %17 : vector<2x8xf32>
      %c0_17 = arith.constant 0 : index
      %c0_18 = arith.constant 0 : index
      %19 = vector.load %arg5[%c0_17, %c0_18] : memref<2x8xf32, #tpu.memory_space<vmem>>, vector<2x8xf32>
      tpu.vector_store %arg5[%c0_17, %c0_18], %18 {strides = array<i32>} : memref<2x8xf32, #tpu.memory_space<vmem>>, vector<2x8xf32>,
    } else {
    }
    return
  }
  func.func @transform_0(%arg0: i32, %arg1: i32) -> (i32, i32, i32) {
    %c0_i32 = arith.constant 0 : i32
    %c0_i32_0 = arith.constant 0 : i32
    return %arg0, %c0_i32, %arg1 : i32, i32, i32
  }
  func.func @transform_1(%arg0: i32, %arg1: i32) -> (i32, i32) {
    %c0_i32 = arith.constant 0 : i32
    %c0_i32_0 = arith.constant 0 : i32
    %c0_i32_1 = arith.constant 0 : i32
    return %c0_i32, %c0_i32_0 : i32, i32
  }
  func.func @transform_2(%arg0: i32, %arg1: i32) -> (i32, i32) {
    %c0_i32 = arith.constant 0 : i32
    %c0_i32_0 = arith.constant 0 : i32
    %c0_i32_1 = arith.constant 0 : i32
    return %c0_i32, %c0_i32_0 : i32, i32
  }
  func.func @transform_3(%arg0: i32, %arg1: i32) -> (i32, i32) {
    %c0_i32 = arith.constant 0 : i32
    %c0_i32_0 = arith.constant 0 : i32
    return %arg0, %c0_i32 : i32, i32
  }
}

</mosaic_0001>

<llo_original>
// kernel: tpu_custom_call.1
$region0: #{tpu_custom_call.1}
  #allocation0 [shape = 'u32[]', space=smem, size = 0x4, offset = 0x4, fixed_abs, tag = 'smem constant byte address 0x4 - core index']
  #allocation1 [shape = 'u32[144,128]{1,0:T(1,128)}', space=vmem, size = 0x12000, scoped, tag = 'internal scratch']
  #allocation2 [shape = 'f32[2,32]{1,0:T(2,128)}', space=vmem, size = 0x400, scoped, tag = 'scratch operand']
  %s0 = inlined_call_operand.hbm [shape: f32[2,32,256], index: 0, kind: input, shape index: {}]
  %s1 = inlined_call_operand.vmem [shape: f32[32,8], index: 1, kind: input, shape index: {}]
  %s2 = inlined_call_operand.vmem [shape: f32[1,8], index: 2, kind: input, shape index: {}]
  %s3 = inlined_call_operand.hbm [shape: f32[2,8], index: 3, kind: output, shape index: {}]
  %s4 = sld [smem:[#allocation0]]
  $region34: #{tpu_custom_call.1} parent=0
    _
  %s6 = ssub.s32 1, %s4
  %s7 = scalar_select 0, %s6, %s4
  $region1: #{tpu_custom_call.1} parent=0
    #allocation3 [shape = 'u8[65536]{0}', space=vmem, size = 0x10000, scoped, tag = 'input window, operand 0, single buffered']
    #allocation4 [shape = 's32[1]{0}', space=sflag, size = 0x4, scoped, tag = 'scoped memory for tpu_custom_call.1']
    #allocation5 [shape = 's32[1]{0}', space=sflag, size = 0x4, scoped, tag = 'scoped memory for tpu_custom_call.1']
    #allocation6 [shape = 'u8[1024]{0}', space=vmem, size = 0x400, scoped, tag = 'output window, operand 0, single buffered']
    %8 = vsyncpa [#allocation4], 0
    %9 = vsyncpa [#allocation5], 0
    // Predicated region
    $region2: #{tpu_custom_call.1} parent=1 // pred_check
      _
    $region3: #{tpu_custom_call.1} parent=1 // pred_check_branch
      %11 = sbr.rel (0) target = $region5
    $region4: #{tpu_custom_call.1} parent=1 // pred_region
      %s13 = ssub.s32 2048, 2048
      %14 = vsyncadd [#allocation4], %s13
      %s15 = sshll.u32 [#allocation3], 4
      %s16 = int_to_ptr.vmem [resolvable:$true] %s15
      %21 = dma.hbm_to_vmem [thread:$0]  %s0, 2048, %s16, [#allocation4], 256, 256, 16
    $region5: #{tpu_custom_call.1} parent=1 // pred_fallthru
      _
    // Predicated region
    $region6: #{tpu_custom_call.1} parent=1 // pred_check
      _
    $region7: #{tpu_custom_call.1} parent=1 // pred_check_branch
      %23 = sbr.rel (0) target = $region9
    $region8: #{tpu_custom_call.1} parent=1 // pred_region
      _
    $region9: #{tpu_custom_call.1} parent=1 // pred_fallthru
      _
    // Predicated region
    $region10: #{tpu_custom_call.1} parent=1 // pred_check
      _
    $region11: #{tpu_custom_call.1} parent=1 // pred_check_branch
      %25 = sbr.rel (0) target = $region13
    $region12: #{tpu_custom_call.1} parent=1 // pred_region
      _
    $region13: #{tpu_custom_call.1} parent=1 // pred_fallthru
      _
    // Predicated region
    $region14: #{tpu_custom_call.1} parent=1 // pred_check
      _
    $region15: #{tpu_custom_call.1} parent=1 // pred_check_branch
      %27 = sbr.rel (0) target = $region17
    $region16: #{tpu_custom_call.1} parent=1 // pred_region
      %28 = dma.done [#allocation4], 2048
    $region17: #{tpu_custom_call.1} parent=1 // pred_fallthru
      _
    %p29 = scmp.eq.s32.totalorder 0, 0
    // Predicated region
    $region18: #{tpu_custom_call.1} parent=1 // pred_check
      %p30 = pneg %p29
    $region19: #{tpu_custom_call.1} parent=1 // pred_check_branch
      %32 = sbr.rel (%p30) target = $region21
    $region20: #{tpu_custom_call.1} parent=1 // pred_region
      %vm33 = vcmask 254976
      %34 = vst.msk [vmem:[#allocation2] sm:$0x3] %vm33, 0.0
    $region21: #{tpu_custom_call.1} parent=1 // pred_fallthru
      _
    %v35 = vld [vmem:[#allocation3] sm:$0xff]
    %v36 = vld [vmem:[#allocation3 + $0x8] sm:$0xff]
    %v37 = vld [vmem:[#allocation3 + $0x10] sm:$0xff]
    %v38 = vld [vmem:[#allocation3 + $0x18] sm:$0xff]
    %v39 = vld [vmem:[#allocation3 + $0x20] sm:$0xff]
    %v40 = vld [vmem:[#allocation3 + $0x28] sm:$0xff]
    %v41 = vld [vmem:[#allocation3 + $0x30] sm:$0xff]
    %v42 = vld [vmem:[#allocation3 + $0x38] sm:$0xff]
    %v43 = vld [vmem:[#allocation3 + $0x40] sm:$0xff]
    %v44 = vld [vmem:[#allocation3 + $0x48] sm:$0xff]
    %v45 = vld [vmem:[#allocation3 + $0x50] sm:$0xff]
    %v46 = vld [vmem:[#allocation3 + $0x58] sm:$0xff]
    %v47 = vld [vmem:[#allocation3 + $0x60] sm:$0xff]
    %v48 = vld [vmem:[#allocation3 + $0x68] sm:$0xff]
    %v49 = vld [vmem:[#allocation3 + $0x70] sm:$0xff]
    %v50 = vld [vmem:[#allocation3 + $0x78] sm:$0xff]
    %v51 = vld [vmem:[#allocation2] sm:$0x3]
    %v52 = vadd.f32 %v35, %v36
    %53 = vadd.xlane.f32.xlu0 %v52
    %v54 = vpop.xlane.xlu0 %53
    %v55 = vadd.f32 %v37, %v38
    %56 = vadd.xlane.f32.xlu0 %v55
    %v57 = vpop.xlane.xlu0 %56
    %v58 = vadd.f32 %v39, %v40
    %59 = vadd.xlane.f32.xlu0 %v58
    %v60 = vpop.xlane.xlu0 %59
    %v61 = vadd.f32 %v41, %v42
    %62 = vadd.xlane.f32.xlu0 %v61
    %v63 = vpop.xlane.xlu0 %62
    %v64 = vadd.f32 %v43, %v44
    %65 = vadd.xlane.f32.xlu0 %v64
    %v66 = vpop.xlane.xlu0 %65
    %v67 = vadd.f32 %v45, %v46
    %68 = vadd.xlane.f32.xlu0 %v67
    %v69 = vpop.xlane.xlu0 %68
    %v70 = vadd.f32 %v47, %v48
    %71 = vadd.xlane.f32.xlu0 %v70
    %v72 = vpop.xlane.xlu0 %71
    %v73 = vadd.f32 %v49, %v50
    %74 = vadd.xlane.f32.xlu0 %v73
    %v75 = vpop.xlane.xlu0 %74
    %v84 = vlaneseq
    %v85 = vand.u32 %v84, 127
    %v86 = vlaneseq
    %v87 = vshrl.u32 %v86, 7
    %v88 = vsub.s32 %v85, %v87
    %v89 = vrot.slane %v54, %v88
    %v90 = vadd.s32 %v85, 4294967288
    %v91 = vlaneseq
    %v92 = vshrl.u32 %v91, 7
    %v93 = vsub.s32 %v90, %v92
    %v94 = vrot.slane %v57, %v93
    %vm95 = vcmask 130112
    %v96 = vsel %vm95, %v94, %v89
    %v97 = vadd.s32 %v85, 4294967280
    %v98 = vlaneseq
    %v99 = vshrl.u32 %v98, 7
    %v100 = vsub.s32 %v97, %v99
    %v101 = vrot.slane %v60, %v100
    %vm102 = vcmask 195712
    %v103 = vsel %vm102, %v101, %v96
    %v104 = vadd.s32 %v85, 4294967272
    %v105 = vlaneseq
    %v106 = vshrl.u32 %v105, 7
    %v107 = vsub.s32 %v104, %v106
    %v108 = vrot.slane %v63, %v107
    %vm109 = vcmask 261312
    %v110 = vsel %vm109, %v108, %v103
    %v111 = vlaneseq
    %v112 = vshrl.u32 %v111, 7
    %v113 = vsub.s32 %v85, %v112
    %v114 = vrot.slane %v66, %v113
    %v115 = vlaneseq
    %v116 = vshrl.u32 %v115, 7
    %v117 = vsub.s32 %v90, %v116
    %v118 = vrot.slane %v69, %v117
    %v119 = vsel %vm95, %v118, %v114
    %v120 = vlaneseq
    %v121 = vshrl.u32 %v120, 7
    %v122 = vsub.s32 %v97, %v121
    %v123 = vrot.slane %v72, %v122
    %v124 = vsel %vm102, %v123, %v119
    %v125 = vlaneseq
    %v126 = vshrl.u32 %v125, 7
    %v127 = vsub.s32 %v104, %v126
    %v128 = vrot.slane %v75, %v127
    %v129 = vsel %vm109, %v128, %v124
    %vm130 = vcmask 1041409
    %v131 = vsel %vm130, %v129, %v110
    %v133 = vadd.f32 %v51, %v131
    %vm134 = vcmask 254976
    %135 = vst.msk [vmem:[#allocation2] sm:$0x3] %vm134, %v133
    // Predicated region
    $region22: #{tpu_custom_call.1} parent=1 // pred_check
      %p136 = pneg %p29
    $region23: #{tpu_custom_call.1} parent=1 // pred_check_branch
      %138 = sbr.rel (%p136) target = $region25
    $region24: #{tpu_custom_call.1} parent=1 // pred_region
      %v139 = vld [vmem:[#allocation2] sm:$0x3]
      %v140 = vmul.f32 %v139, 0.00390625
      %v141 = vld [vmem:[%s1] sm:$0xff]
      %v142 = vld [vmem:[%s1 + $0x8] sm:$0xff]
      %v143 = vld [vmem:[%s1 + $0x10] sm:$0xff]
      %v144 = vld [vmem:[%s1 + $0x18] sm:$0xff]
      %v145 = vld [vmem:[%s2] sm:$0x1]
      %v147 = vlaneseq
      %v148 = vshrl.u32 %v147, 7
      %v149 = vsub.s32 0, %v148
      %v150 = vrot.slane %v145, %v149
      %vm152 = vcmask 261120
      %v154 = vsel %vm152, %v140, 0
      %156 = vmatprep.subr.mxu0 0.0
      %v157 = vand.u32 %v141, 4294901760
      %158 = vmatpush1.msra.mxu0 %v157
      %159 = vmatprep.subr.mxu0 0.0
      %v160 = vand.u32 %v142, 4294901760
      %161 = vmatpush1.msra.mxu0 %v160
      %162 = vmatprep.subr.mxu0 0.0
      %v163 = vand.u32 %v143, 4294901760
      %164 = vmatpush1.msra.mxu0 %v163
      %165 = vmatprep.subr.mxu0 0.0
      %v166 = vand.u32 %v144, 4294901760
      %167 = vmatpush1.msra.mxu0 %v166
      %168 = vmatprep.subr.mxu0 0.0
      %169 = vmatpush1.msra.mxu0 0.0
      %170 = vmatprep.subr.mxu0 0.0
      %171 = vmatpush1.msra.mxu0 0.0
      %172 = vmatprep.subr.mxu0 0.0
      %173 = vmatpush1.msra.mxu0 0.0
      %174 = vmatprep.subr.mxu0 0.0
      %175 = vmatpush1.msra.mxu0 0.0
      %176 = vmatprep.subr.mxu0 0.0
      %177 = vmatpush1.msra.mxu0 0.0
      %178 = vmatprep.subr.mxu0 0.0
      %179 = vmatpush1.msra.mxu0 0.0
      %180 = vmatprep.subr.mxu0 0.0
      %181 = vmatpush1.msra.mxu0 0.0
      %182 = vmatprep.subr.mxu0 0.0
      %183 = vmatpush1.msra.mxu0 0.0
      %184 = vmatprep.subr.mxu0 0.0
      %185 = vmatpush1.msra.mxu0 0.0
      %186 = vmatprep.subr.mxu0 0.0
      %187 = vmatpush1.msra.mxu0 0.0
      %188 = vmatprep.subr.mxu0 0.0
      %189 = vmatpush1.msra.mxu0 0.0
      %190 = vmatprep.subr.mxu0 0.0
      %191 = vmatpush1.msra.mxu0 0.0
      %192 = vmatprep.subr.mxu0 0.0
      %193 = vmatpush1.msra.mxu0 0.0
      %194 = vmatprep.subr.mxu0 0.0
      %195 = vmatpush1.msra.mxu0 0.0
      %196 = vmatprep.subr.mxu0 0.0
      %197 = vmatpush1.msra.mxu0 0.0
      %198 = vmatprep.subr.mxu0 0.0
      %199 = vmatpush1.msra.mxu0 0.0
      %200 = vmatprep.subr.mxu0 0.0
      %201 = vmatpush1.msra.mxu0 0.0
      %202 = vmatprep.subr.mxu0 0.0
      %203 = vmatpush1.msra.mxu0 0.0
      %204 = vmatprep.subr.mxu0 0.0
      %205 = vmatpush1.msra.mxu0 0.0
      %206 = vmatprep.subr.mxu0 0.0
      %207 = vmatpush1.msra.mxu0 0.0
      %208 = vmatprep.subr.mxu0 0.0
      %209 = vmatpush1.msra.mxu0 0.0
      %210 = vmatprep.subr.mxu0 0.0
      %211 = vmatpush1.msra.mxu0 0.0
      %212 = vmatprep.subr.mxu0 0.0
      %213 = vmatpush1.msra.mxu0 0.0
      %214 = vmatprep.subr.mxu0 0.0
      %215 = vmatpush1.msra.mxu0 0.0
      %216 = vmatprep.subr.mxu0 0.0
      %217 = vmatpush1.msra.mxu0 0.0
      %218 = vmatprep.subr.mxu0 0.0
      %219 = vmatpush1.msra.mxu0 0.0
      %220 = vmatprep.subr.mxu0 0.0
      %221 = vmatpush1.msra.mxu0 0.0
      %222 = vmatprep.subr.mxu0 0.0
      %223 = vmatpush1.msra.mxu0 0.0
      %224 = vmatprep.mubr.f32.mxu0 0.0
      %v225 = vand.u32 %v154, 4294901760
      %v226 = vsub.f32 %v154, %v225
      %v227 = vand.u32 %v226, 4294901760
      %v228 = vsub.f32 %v226, %v227
      %v229 = vand.u32 %v228, 4294901760
      %230 = vmatmul.mubr.f32.gmra.mrb[0].mxu0 %v229
      %v231 = vpop.f32.mrb[0].mxu0
      %v232 = vadd.f32 %v150, %v231
      %v233 = vpop.f32.mrb[0].mxu0
      %234 = vdwg.mxu0
      %235 = vmatprep.subr.mxu0 0.0
      %v236 = vand.u32 %v141, 4294901760
      %v237 = vsub.f32 %v141, %v236
      %v238 = vand.u32 %v237, 4294901760
      %v239 = vsub.f32 %v237, %v238
      %v240 = vand.u32 %v239, 4294901760
      %241 = vmatpush1.msra.mxu0 %v240
      %242 = vmatprep.subr.mxu0 0.0
      %v243 = vand.u32 %v142, 4294901760
      %v244 = vsub.f32 %v142, %v243
      %v245 = vand.u32 %v244, 4294901760
      %v246 = vsub.f32 %v244, %v245
      %v247 = vand.u32 %v246, 4294901760
      %248 = vmatpush1.msra.mxu0 %v247
      %249 = vmatprep.subr.mxu0 0.0
      %v250 = vand.u32 %v143, 4294901760
      %v251 = vsub.f32 %v143, %v250
      %v252 = vand.u32 %v251, 4294901760
      %v253 = vsub.f32 %v251, %v252
      %v254 = vand.u32 %v253, 4294901760
      %255 = vmatpush1.msra.mxu0 %v254
      %256 = vmatprep.subr.mxu0 0.0
      %v257 = vand.u32 %v144, 4294901760
      %v258 = vsub.f32 %v144, %v257
      %v259 = vand.u32 %v258, 4294901760
      %v260 = vsub.f32 %v258, %v259
      %v261 = vand.u32 %v260, 4294901760
      %262 = vmatpush1.msra.mxu0 %v261
      %263 = vmatprep.subr.mxu0 0.0
      %264 = vmatpush1.msra.mxu0 0.0
      %265 = vmatprep.subr.mxu0 0.0
      %266 = vmatpush1.msra.mxu0 0.0
      %267 = vmatprep.subr.mxu0 0.0
      %268 = vmatpush1.msra.mxu0 0.0
      %269 = vmatprep.subr.mxu0 0.0
      %270 = vmatpush1.msra.mxu0 0.0
      %271 = vmatprep.subr.mxu0 0.0
      %272 = vmatpush1.msra.mxu0 0.0
      %273 = vmatprep.subr.mxu0 0.0
      %274 = vmatpush1.msra.mxu0 0.0
      %275 = vmatprep.subr.mxu0 0.0
      %276 = vmatpush1.msra.mxu0 0.0
      %277 = vmatprep.subr.mxu0 0.0
      %278 = vmatpush1.msra.mxu0 0.0
      %279 = vmatprep.subr.mxu0 0.0
      %280 = vmatpush1.msra.mxu0 0.0
      %281 = vmatprep.subr.mxu0 0.0
      %282 = vmatpush1.msra.mxu0 0.0
      %283 = vmatprep.subr.mxu0 0.0
      %284 = vmatpush1.msra.mxu0 0.0
      %285 = vmatprep.subr.mxu0 0.0
      %286 = vmatpush1.msra.mxu0 0.0
      %287 = vmatprep.subr.mxu0 0.0
      %288 = vmatpush1.msra.mxu0 0.0
      %289 = vmatprep.subr.mxu0 0.0
      %290 = vmatpush1.msra.mxu0 0.0
      %291 = vmatprep.subr.mxu0 0.0
      %292 = vmatpush1.msra.mxu0 0.0
      %293 = vmatprep.subr.mxu0 0.0
      %294 = vmatpush1.msra.mxu0 0.0
      %295 = vmatprep.subr.mxu0 0.0
      %296 = vmatpush1.msra.mxu0 0.0
      %297 = vmatprep.subr.mxu0 0.0
      %298 = vmatpush1.msra.mxu0 0.0
      %299 = vmatprep.subr.mxu0 0.0
      %300 = vmatpush1.msra.mxu0 0.0
      %301 = vmatprep.subr.mxu0 0.0
      %302 = vmatpush1.msra.mxu0 0.0
      %303 = vmatprep.subr.mxu0 0.0
      %304 = vmatpush1.msra.mxu0 0.0
      %305 = vmatprep.subr.mxu0 0.0
      %306 = vmatpush1.msra.mxu0 0.0
      %307 = vmatprep.subr.mxu0 0.0
      %308 = vmatpush1.msra.mxu0 0.0
      %309 = vmatprep.subr.mxu0 0.0
      %310 = vmatpush1.msra.mxu0 0.0
      %311 = vmatprep.subr.mxu0 0.0
      %312 = vmatpush1.msra.mxu0 0.0
      %313 = vmatprep.subr.mxu0 0.0
      %314 = vmatpush1.msra.mxu0 0.0
      %315 = vmatprep.subr.mxu0 0.0
      %316 = vmatpush1.msra.mxu0 0.0
      %317 = vmatprep.subr.mxu0 0.0
      %318 = vmatpush1.msra.mxu0 0.0
      %319 = vmatprep.mubr.f32.mxu0 0.0
      %v320 = vand.u32 %v154, 4294901760
      %321 = vmatmul.mubr.f32.gmra.mrb[0].mxu0 %v320
      %v322 = vpop.f32.mrb[0].mxu0
      %v323 = vadd.f32 %v232, %v322
      %v324 = vpop.f32.mrb[0].mxu0
      %325 = vdwg.mxu0
      %326 = vmatprep.subr.mxu0 0.0
      %v327 = vand.u32 %v141, 4294901760
      %v328 = vsub.f32 %v141, %v327
      %329 = vmatpush1.msra.mxu0 %v328
      %330 = vmatprep.subr.mxu0 0.0
      %v331 = vand.u32 %v142, 4294901760
      %v332 = vsub.f32 %v142, %v331
      %333 = vmatpush1.msra.mxu0 %v332
      %334 = vmatprep.subr.mxu0 0.0
      %v335 = vand.u32 %v143, 4294901760
      %v336 = vsub.f32 %v143, %v335
      %337 = vmatpush1.msra.mxu0 %v336
      %338 = vmatprep.subr.mxu0 0.0
      %v339 = vand.u32 %v144, 4294901760
      %v340 = vsub.f32 %v144, %v339
      %341 = vmatpush1.msra.mxu0 %v340
      %342 = vmatprep.subr.mxu0 0.0
      %343 = vmatpush1.msra.mxu0 0.0
      %344 = vmatprep.subr.mxu0 0.0
      %345 = vmatpush1.msra.mxu0 0.0
      %346 = vmatprep.subr.mxu0 0.0
      %347 = vmatpush1.msra.mxu0 0.0
      %348 = vmatprep.subr.mxu0 0.0
      %349 = vmatpush1.msra.mxu0 0.0
      %350 = vmatprep.subr.mxu0 0.0
      %351 = vmatpush1.msra.mxu0 0.0
      %352 = vmatprep.subr.mxu0 0.0
      %353 = vmatpush1.msra.mxu0 0.0
      %354 = vmatprep.subr.mxu0 0.0
      %355 = vmatpush1.msra.mxu0 0.0
      %356 = vmatprep.subr.mxu0 0.0
      %357 = vmatpush1.msra.mxu0 0.0
      %358 = vmatprep.subr.mxu0 0.0
      %359 = vmatpush1.msra.mxu0 0.0
      %360 = vmatprep.subr.mxu0 0.0
      %361 = vmatpush1.msra.mxu0 0.0
      %362 = vmatprep.subr.mxu0 0.0
      %363 = vmatpush1.msra.mxu0 0.0
      %364 = vmatprep.subr.mxu0 0.0
      %365 = vmatpush1.msra.mxu0 0.0
      %366 = vmatprep.subr.mxu0 0.0
      %367 = vmatpush1.msra.mxu0 0.0
      %368 = vmatprep.subr.mxu0 0.0
      %369 = vmatpush1.msra.mxu0 0.0
      %370 = vmatprep.subr.mxu0 0.0
      %371 = vmatpush1.msra.mxu0 0.0
      %372 = vmatprep.subr.mxu0 0.0
      %373 = vmatpush1.msra.mxu0 0.0
      %374 = vmatprep.subr.mxu0 0.0
      %375 = vmatpush1.msra.mxu0 0.0
      %376 = vmatprep.subr.mxu0 0.0
      %377 = vmatpush1.msra.mxu0 0.0
      %378 = vmatprep.subr.mxu0 0.0
      %379 = vmatpush1.msra.mxu0 0.0
      %380 = vmatprep.subr.mxu0 0.0
      %381 = vmatpush1.msra.mxu0 0.0
      %382 = vmatprep.subr.mxu0 0.0
      %383 = vmatpush1.msra.mxu0 0.0
      %384 = vmatprep.subr.mxu0 0.0
      %385 = vmatpush1.msra.mxu0 0.0
      %386 = vmatprep.subr.mxu0 0.0
      %387 = vmatpush1.msra.mxu0 0.0
      %388 = vmatprep.subr.mxu0 0.0
      %389 = vmatpush1.msra.mxu0 0.0
      %390 = vmatprep.subr.mxu0 0.0
      %391 = vmatpush1.msra.mxu0 0.0
      %392 = vmatprep.subr.mxu0 0.0
      %393 = vmatpush1.msra.mxu0 0.0
      %394 = vmatprep.subr.mxu0 0.0
      %395 = vmatpush1.msra.mxu0 0.0
      %396 = vmatprep.subr.mxu0 0.0
      %397 = vmatpush1.msra.mxu0 0.0
      %398 = vmatprep.mubr.f32.mxu0 0.0
      %v399 = vand.u32 %v154, 4294901760
      %v400 = vsub.f32 %v154, %v399
      %401 = vmatmul.mubr.f32.gmra.mrb[0].mxu0 %v400
      %v402 = vpop.f32.mrb[0].mxu0
      %v403 = vadd.f32 %v323, %v402
      %v404 = vpop.f32.mrb[0].mxu0
      %405 = vdwg.mxu0
      %406 = vmatprep.subr.mxu0 0.0
      %v407 = vand.u32 %v141, 4294901760
      %408 = vmatpush1.msra.mxu0 %v407
      %409 = vmatprep.subr.mxu0 0.0
      %v410 = vand.u32 %v142, 4294901760
      %411 = vmatpush1.msra.mxu0 %v410
      %412 = vmatprep.subr.mxu0 0.0
      %v413 = vand.u32 %v143, 4294901760
      %414 = vmatpush1.msra.mxu0 %v413
      %415 = vmatprep.subr.mxu0 0.0
      %v416 = vand.u32 %v144, 4294901760
      %417 = vmatpush1.msra.mxu0 %v416
      %418 = vmatprep.subr.mxu0 0.0
      %419 = vmatpush1.msra.mxu0 0.0
      %420 = vmatprep.subr.mxu0 0.0
      %421 = vmatpush1.msra.mxu0 0.0
      %422 = vmatprep.subr.mxu0 0.0
      %423 = vmatpush1.msra.mxu0 0.0
      %424 = vmatprep.subr.mxu0 0.0
      %425 = vmatpush1.msra.mxu0 0.0
      %426 = vmatprep.subr.mxu0 0.0
      %427 = vmatpush1.msra.mxu0 0.0
      %428 = vmatprep.subr.mxu0 0.0
      %429 = vmatpush1.msra.mxu0 0.0
      %430 = vmatprep.subr.mxu0 0.0
      %431 = vmatpush1.msra.mxu0 0.0
      %432 = vmatprep.subr.mxu0 0.0
      %433 = vmatpush1.msra.mxu0 0.0
      %434 = vmatprep.subr.mxu0 0.0
      %435 = vmatpush1.msra.mxu0 0.0
      %436 = vmatprep.subr.mxu0 0.0
      %437 = vmatpush1.msra.mxu0 0.0
      %438 = vmatprep.subr.mxu0 0.0
      %439 = vmatpush1.msra.mxu0 0.0
      %440 = vmatprep.subr.mxu0 0.0
      %441 = vmatpush1.msra.mxu0 0.0
      %442 = vmatprep.subr.mxu0 0.0
      %443 = vmatpush1.msra.mxu0 0.0
      %444 = vmatprep.subr.mxu0 0.0
      %445 = vmatpush1.msra.mxu0 0.0
      %446 = vmatprep.subr.mxu0 0.0
      %447 = vmatpush1.msra.mxu0 0.0
      %448 = vmatprep.subr.mxu0 0.0
      %449 = vmatpush1.msra.mxu0 0.0
      %450 = vmatprep.subr.mxu0 0.0
      %451 = vmatpush1.msra.mxu0 0.0
      %452 = vmatprep.subr.mxu0 0.0
      %453 = vmatpush1.msra.mxu0 0.0
      %454 = vmatprep.subr.mxu0 0.0
      %455 = vmatpush1.msra.mxu0 0.0
      %456 = vmatprep.subr.mxu0 0.0
      %457 = vmatpush1.msra.mxu0 0.0
      %458 = vmatprep.subr.mxu0 0.0
      %459 = vmatpush1.msra.mxu0 0.0
      %460 = vmatprep.subr.mxu0 0.0
      %461 = vmatpush1.msra.mxu0 0.0
      %462 = vmatprep.subr.mxu0 0.0
      %463 = vmatpush1.msra.mxu0 0.0
      %464 = vmatprep.subr.mxu0 0.0
      %465 = vmatpush1.msra.mxu0 0.0
      %466 = vmatprep.subr.mxu0 0.0
      %467 = vmatpush1.msra.mxu0 0.0
      %468 = vmatprep.subr.mxu0 0.0
      %469 = vmatpush1.msra.mxu0 0.0
      %470 = vmatprep.subr.mxu0 0.0
      %471 = vmatpush1.msra.mxu0 0.0
      %472 = vmatprep.subr.mxu0 0.0
      %473 = vmatpush1.msra.mxu0 0.0
      %474 = vmatprep.mubr.f32.mxu0 0.0
      %v475 = vand.u32 %v154, 4294901760
      %v476 = vsub.f32 %v154, %v475
      %v477 = vand.u32 %v476, 4294901760
      %478 = vmatmul.mubr.f32.gmra.mrb[0].mxu0 %v477
      %v479 = vpop.f32.mrb[0].mxu0
      %v480 = vadd.f32 %v403, %v479
      %v481 = vpop.f32.mrb[0].mxu0
      %482 = vdwg.mxu0
      %483 = vmatprep.subr.mxu0 0.0
      %v484 = vand.u32 %v141, 4294901760
      %v485 = vsub.f32 %v141, %v484
      %v486 = vand.u32 %v485, 4294901760
      %487 = vmatpush1.msra.mxu0 %v486
      %488 = vmatprep.subr.mxu0 0.0
      %v489 = vand.u32 %v142, 4294901760
      %v490 = vsub.f32 %v142, %v489
      %v491 = vand.u32 %v490, 4294901760
      %492 = vmatpush1.msra.mxu0 %v491
      %493 = vmatprep.subr.mxu0 0.0
      %v494 = vand.u32 %v143, 4294901760
      %v495 = vsub.f32 %v143, %v494
      %v496 = vand.u32 %v495, 4294901760
      %497 = vmatpush1.msra.mxu0 %v496
      %498 = vmatprep.subr.mxu0 0.0
      %v499 = vand.u32 %v144, 4294901760
      %v500 = vsub.f32 %v144, %v499
      %v501 = vand.u32 %v500, 4294901760
      %502 = vmatpush1.msra.mxu0 %v501
      %503 = vmatprep.subr.mxu0 0.0
      %504 = vmatpush1.msra.mxu0 0.0
      %505 = vmatprep.subr.mxu0 0.0
      %506 = vmatpush1.msra.mxu0 0.0
      %507 = vmatprep.subr.mxu0 0.0
      %508 = vmatpush1.msra.mxu0 0.0
      %509 = vmatprep.subr.mxu0 0.0
      %510 = vmatpush1.msra.mxu0 0.0
      %511 = vmatprep.subr.mxu0 0.0
      %512 = vmatpush1.msra.mxu0 0.0
      %513 = vmatprep.subr.mxu0 0.0
      %514 = vmatpush1.msra.mxu0 0.0
      %515 = vmatprep.subr.mxu0 0.0
      %516 = vmatpush1.msra.mxu0 0.0
      %517 = vmatprep.subr.mxu0 0.0
      %518 = vmatpush1.msra.mxu0 0.0
      %519 = vmatprep.subr.mxu0 0.0
      %520 = vmatpush1.msra.mxu0 0.0
      %521 = vmatprep.subr.mxu0 0.0
      %522 = vmatpush1.msra.mxu0 0.0
      %523 = vmatprep.subr.mxu0 0.0
      %524 = vmatpush1.msra.mxu0 0.0
      %525 = vmatprep.subr.mxu0 0.0
      %526 = vmatpush1.msra.mxu0 0.0
      %527 = vmatprep.subr.mxu0 0.0
      %528 = vmatpush1.msra.mxu0 0.0
      %529 = vmatprep.subr.mxu0 0.0
      %530 = vmatpush1.msra.mxu0 0.0
      %531 = vmatprep.subr.mxu0 0.0
      %532 = vmatpush1.msra.mxu0 0.0
      %533 = vmatprep.subr.mxu0 0.0
      %534 = vmatpush1.msra.mxu0 0.0
      %535 = vmatprep.subr.mxu0 0.0
      %536 = vmatpush1.msra.mxu0 0.0
      %537 = vmatprep.subr.mxu0 0.0
      %538 = vmatpush1.msra.mxu0 0.0
      %539 = vmatprep.subr.mxu0 0.0
      %540 = vmatpush1.msra.mxu0 0.0
      %541 = vmatprep.subr.mxu0 0.0
      %542 = vmatpush1.msra.mxu0 0.0
      %543 = vmatprep.subr.mxu0 0.0
      %544 = vmatpush1.msra.mxu0 0.0
      %545 = vmatprep.subr.mxu0 0.0
      %546 = vmatpush1.msra.mxu0 0.0
      %547 = vmatprep.subr.mxu0 0.0
      %548 = vmatpush1.msra.mxu0 0.0
      %549 = vmatprep.subr.mxu0 0.0
      %550 = vmatpush1.msra.mxu0 0.0
      %551 = vmatprep.subr.mxu0 0.0
      %552 = vmatpush1.msra.mxu0 0.0
      %553 = vmatprep.subr.mxu0 0.0
      %554 = vmatpush1.msra.mxu0 0.0
      %555 = vmatprep.subr.mxu0 0.0
      %556 = vmatpush1.msra.mxu0 0.0
      %557 = vmatprep.subr.mxu0 0.0
      %558 = vmatpush1.msra.mxu0 0.0
      %559 = vmatprep.mubr.f32.mxu0 0.0
      %v560 = vand.u32 %v154, 4294901760
      %561 = vmatmul.mubr.f32.gmra.mrb[0].mxu0 %v560
      %v562 = vpop.f32.mrb[0].mxu0
      %v563 = vadd.f32 %v480, %v562
      %v564 = vpop.f32.mrb[0].mxu0
      %565 = vdwg.mxu0
      %566 = vmatprep.subr.mxu0 0.0
      %v567 = vand.u32 %v141, 4294901760
      %568 = vmatpush1.msra.mxu0 %v567
      %569 = vmatprep.subr.mxu0 0.0
      %v570 = vand.u32 %v142, 4294901760
      %571 = vmatpush1.msra.mxu0 %v570
      %572 = vmatprep.subr.mxu0 0.0
      %v573 = vand.u32 %v143, 4294901760
      %574 = vmatpush1.msra.mxu0 %v573
      %575 = vmatprep.subr.mxu0 0.0
      %v576 = vand.u32 %v144, 4294901760
      %577 = vmatpush1.msra.mxu0 %v576
      %578 = vmatprep.subr.mxu0 0.0
      %579 = vmatpush1.msra.mxu0 0.0
      %580 = vmatprep.subr.mxu0 0.0
      %581 = vmatpush1.msra.mxu0 0.0
      %582 = vmatprep.subr.mxu0 0.0
      %583 = vmatpush1.msra.mxu0 0.0
      %584 = vmatprep.subr.mxu0 0.0
      %585 = vmatpush1.msra.mxu0 0.0
      %586 = vmatprep.subr.mxu0 0.0
      %587 = vmatpush1.msra.mxu0 0.0
      %588 = vmatprep.subr.mxu0 0.0
      %589 = vmatpush1.msra.mxu0 0.0
      %590 = vmatprep.subr.mxu0 0.0
      %591 = vmatpush1.msra.mxu0 0.0
      %592 = vmatprep.subr.mxu0 0.0
      %593 = vmatpush1.msra.mxu0 0.0
      %594 = vmatprep.subr.mxu0 0.0
      %595 = vmatpush1.msra.mxu0 0.0
      %596 = vmatprep.subr.mxu0 0.0
      %597 = vmatpush1.msra.mxu0 0.0
      %598 = vmatprep.subr.mxu0 0.0
      %599 = vmatpush1.msra.mxu0 0.0
      %600 = vmatprep.subr.mxu0 0.0
      %601 = vmatpush1.msra.mxu0 0.0
      %602 = vmatprep.subr.mxu0 0.0
      %603 = vmatpush1.msra.mxu0 0.0
      %604 = vmatprep.subr.mxu0 0.0
      %605 = vmatpush1.msra.mxu0 0.0
      %606 = vmatprep.subr.mxu0 0.0
      %607 = vmatpush1.msra.mxu0 0.0
      %608 = vmatprep.subr.mxu0 0.0
      %609 = vmatpush1.msra.mxu0 0.0
      %610 = vmatprep.subr.mxu0 0.0
      %611 = vmatpush1.msra.mxu0 0.0
      %612 = vmatprep.subr.mxu0 0.0
      %613 = vmatpush1.msra.mxu0 0.0
      %614 = vmatprep.subr.mxu0 0.0
      %615 = vmatpush1.msra.mxu0 0.0
      %616 = vmatprep.subr.mxu0 0.0
      %617 = vmatpush1.msra.mxu0 0.0
      %618 = vmatprep.subr.mxu0 0.0
      %619 = vmatpush1.msra.mxu0 0.0
      %620 = vmatprep.subr.mxu0 0.0
      %621 = vmatpush1.msra.mxu0 0.0
      %622 = vmatprep.subr.mxu0 0.0
      %623 = vmatpush1.msra.mxu0 0.0
      %624 = vmatprep.subr.mxu0 0.0
      %625 = vmatpush1.msra.mxu0 0.0
      %626 = vmatprep.subr.mxu0 0.0
      %627 = vmatpush1.msra.mxu0 0.0
      %628 = vmatprep.subr.mxu0 0.0
      %629 = vmatpush1.msra.mxu0 0.0
      %630 = vmatprep.subr.mxu0 0.0
      %631 = vmatpush1.msra.mxu0 0.0
      %632 = vmatprep.subr.mxu0 0.0
      %633 = vmatpush1.msra.mxu0 0.0
      %634 = vmatprep.mubr.f32.mxu0 0.0
      %v635 = vand.u32 %v154, 4294901760
      %636 = vmatmul.mubr.f32.gmra.mrb[0].mxu0 %v635
      %v637 = vpop.f32.mrb[0].mxu0
      %v638 = vadd.f32 %v563, %v637
      %v639 = vpop.f32.mrb[0].mxu0
      %640 = vdwg.mxu0
      %vm641 = vcmask 58368
      %642 = vst.msk [vmem:[#allocation6] sm:$0x3] %vm641, %v638
    $region25: #{tpu_custom_call.1} parent=1 // pred_fallthru
      _
    // Predicated region
    $region26: #{tpu_custom_call.1} parent=1 // pred_check
      _
    $region27: #{tpu_custom_call.1} parent=1 // pred_check_branch
      %644 = sbr.rel (0) target = $region29
    $region28: #{tpu_custom_call.1} parent=1 // pred_region
      %s646 = ssub.s32 32, 32
      %647 = vsyncadd [#allocation5], %s646
      %s649 = sshll.u32 [#allocation6], 4
      %s650 = int_to_ptr.vmem [resolvable:$true] %s649
      %652 = dma.vmem_to_hbm [thread:$0]  %s650, 32, %s3, [#allocation5]
    $region29: #{tpu_custom_call.1} parent=1 // pred_fallthru
      _
    // Predicated region
    $region30: #{tpu_custom_call.1} parent=1 // pred_check
      _
    $region31: #{tpu_custom_call.1} parent=1 // pred_check_branch
      %654 = sbr.rel (0) target = $region33
    $region32: #{tpu_custom_call.1} parent=1 // pred_region
      %655 = dma.done [#allocation5], 32
    $region33: #{tpu_custom_call.1} parent=1 // pred_fallthru
      _
    %656 = vsyncpa [#allocation4], 1
    %657 = vsyncpa [#allocation5], 1

</llo_original>
